<compile_context>
chip_gen: v7x
topology: tpu7x:2x2x1
jax: 0.10.0
libtpu: 0.0.40
codegen_flags: <defaults>
</compile_context>

<pallas_src>
import functools

import jax
import jax.numpy as jnp
import numpy as np
from jax import lax
from jax.experimental import pallas as pl
from jax.experimental.pallas import tpu as pltpu


def _skipgram_kernel(pos_u_ref, pos_v_ref, neg_idx_ref,   # scalar prefetch (SMEM)
                     u_tbl, v_tbl,                         # embedding tables (HBM, pl.ANY)
                     out_ref,                              # (1, 8, 128) VMEM accumulator
                     ubuf, vbuf, negbuf, sem,              # scratch
                     *, B, TB, K, NB, D):
    c = pl.program_id(0)            # core-group axis ("parallel")
    i = pl.program_id(1)            # batch-block axis ("arbitrary")
    base = (c * NB + i) * TB        # first global row handled by this block

    # ---------------- issue gathers (u/v rows first, they are needed first) ----------------
    @pl.loop(0, TB)
    def _start_uv(r):
        g = base + r
        pltpu.make_async_copy(u_tbl.at[pos_u_ref[g]], ubuf.at[r], sem.at[0]).start()
        pltpu.make_async_copy(v_tbl.at[pos_v_ref[g]], vbuf.at[r], sem.at[1]).start()

    for k in range(K):              # K is small and static
        @pl.loop(0, TB)
        def _start_neg(r, _k=k):
            g = base + r
            pltpu.make_async_copy(v_tbl.at[neg_idx_ref[g * K + _k]],
                                  negbuf.at[_k, r], sem.at[2]).start()

    # ---------------- wait for u/v rows ----------------
    @pl.loop(0, TB)
    def _wait_uv(r):
        pltpu.make_async_copy(u_tbl.at[0], ubuf.at[0], sem.at[0]).wait()
        pltpu.make_async_copy(v_tbl.at[0], vbuf.at[0], sem.at[1]).wait()

    u = ubuf[...].astype(jnp.float32)                      # [TB, D]
    v = vbuf[...].astype(jnp.float32)                      # [TB, D]

    row = lax.broadcasted_iota(jnp.int32, (TB, 1), 0)
    valid = (base + row) < B                               # mask padded rows

    # positive: -logsigmoid(clamp(<u, v>)) == log(1 + exp(-x)), safe under the clamp
    score = jnp.sum(u * v, axis=1, keepdims=True)          # [TB, 1]
    score = jnp.clip(score, -10.0, 10.0)
    pos_sp = jnp.where(valid, jnp.log(1.0 + jnp.exp(-score)), 0.0)

    # ---------------- wait for negative rows (their DMAs overlapped the work above) ----------------
    @pl.loop(0, TB * K)
    def _wait_neg(j):
        pltpu.make_async_copy(v_tbl.at[0], negbuf.at[0, 0], sem.at[2]).wait()

    # negative: mean_k log(1 + exp(clamp(<neg_k, u>))) — per-k fused multiply + reduce
    def k_body(k, acc):
        nk = jnp.sum(negbuf[k].astype(jnp.float32) * u, axis=1, keepdims=True)  # [TB, 1]
        nk = jnp.clip(nk, -10.0, 10.0)
        return acc + jnp.log(1.0 + jnp.exp(nk))

    neg_acc = lax.fori_loop(0, K, k_body,
                            jnp.zeros((TB, 1), jnp.float32), unroll=True)
    neg_sp = jnp.where(valid, neg_acc * (1.0 / K), 0.0)

    # per-block partial sums (one reduction each; total = pos + neg in the wrapper)
    pos_blk = jnp.sum(pos_sp)
    neg_blk = jnp.sum(neg_sp)

    lane = lax.broadcasted_iota(jnp.int32, (1, 8, 128), 2)
    sub = lax.broadcasted_iota(jnp.int32, (1, 8, 128), 1)
    m_pos = ((sub == 0) & (lane == 0)).astype(jnp.float32)
    m_neg = ((sub == 0) & (lane == 1)).astype(jnp.float32)
    contrib = m_pos * pos_blk + m_neg * neg_blk

    @pl.when(i == 0)
    def _init():
        out_ref[...] = jnp.zeros_like(out_ref)

    out_ref[...] += contrib


def skipgram_forward_pallas(u_weight, v_weight, pos_u, pos_v, neg_v,
                            *, tb=256, num_core_groups=2):
    """Fused skip-gram NS forward. Returns (mean(pos+neg), mean(pos), mean(neg))."""
    B = int(pos_u.shape[0])
    K = int(neg_v.shape[1])
    V, D = u_weight.shape

    nb_total = pl.cdiv(B, tb)
    NB = pl.cdiv(nb_total, num_core_groups)      # batch blocks per core group
    B_pad = num_core_groups * NB * tb
    pad = B_pad - B

    pos_u_p = jnp.pad(pos_u.astype(jnp.int32), (0, pad))
    pos_v_p = jnp.pad(pos_v.astype(jnp.int32), (0, pad))
    neg_p = jnp.pad(neg_v.astype(jnp.int32).reshape(-1), (0, pad * K))

    kernel = functools.partial(_skipgram_kernel, B=B, TB=tb, K=K, NB=NB, D=D)

    itm = jnp.dtype(u_weight.dtype).itemsize
    cost = pl.CostEstimate(
        flops=2 * B * (K + 1) * D + 6 * B * (K + 1),
        transcendentals=2 * B * (K + 1),
        bytes_accessed=itm * (2 * B_pad * D + B_pad * K * D)
        + 4 * (2 * B_pad + B_pad * K)
        + 4 * num_core_groups * 8 * 128,
    )

    out = pl.pallas_call(
        kernel,
        out_shape=jax.ShapeDtypeStruct((num_core_groups, 8, 128), jnp.float32),
        grid_spec=pltpu.PrefetchScalarGridSpec(
            num_scalar_prefetch=3,
            grid=(num_core_groups, NB),
            in_specs=[pl.BlockSpec(memory_space=pl.ANY),    # u table stays in HBM
                      pl.BlockSpec(memory_space=pl.ANY)],   # v table stays in HBM
            out_specs=pl.BlockSpec((1, 8, 128),
                                   lambda c, i, pu, pv, nv: (c, 0, 0)),
            scratch_shapes=[
                pltpu.VMEM((tb, D), u_weight.dtype),         # gathered u rows
                pltpu.VMEM((tb, D), v_weight.dtype),         # gathered v rows
                pltpu.VMEM((K, tb, D), v_weight.dtype),      # gathered negative rows
                pltpu.SemaphoreType.DMA((3,)),
            ]),
        compiler_params=pltpu.CompilerParams(
            dimension_semantics=("parallel", "arbitrary"),
            vmem_limit_bytes=32 * 1024 * 1024),
        cost_estimate=cost,
    )(pos_u_p, pos_v_p, neg_p, u_weight, v_weight)

    pos_sum = jnp.sum(out[:, 0, 0])
    neg_sum = jnp.sum(out[:, 0, 1])
    inv_b = 1.0 / B
    pos_mean = pos_sum * inv_b
    neg_mean = neg_sum * inv_b
    return pos_mean + neg_mean, pos_mean, neg_mean


class SkipGramModelPallas:
    """JAX/Pallas port of the PyTorch SkipGramModel forward pass (gather fused)."""

    def __init__(self, emb_size, emb_dimension, key, param_dtype=jnp.float32):
        self.emb_size = emb_size
        self.emb_dimension = emb_dimension
        initrange = 1.0 / emb_dimension
        # matches init.uniform_(u, -initrange, initrange); init.constant_(v, 0)
        self.u_weight = jax.random.uniform(
            key, (emb_size, emb_dimension), jnp.float32,
            -initrange, initrange).astype(param_dtype)
        self.v_weight = jnp.zeros((emb_size, emb_dimension), param_dtype)

    def __call__(self, pos_u, pos_v, neg_v, *, tb=256, num_core_groups=2):
        return skipgram_forward_pallas(self.u_weight, self.v_weight,
                                       pos_u, pos_v, neg_v,
                                       tb=tb, num_core_groups=num_core_groups)


def _reference_forward(u_w, v_w, pos_u, pos_v, neg_v):
    """Pure-JAX mirror of the PyTorch forward (gather + f32 math) for verification."""
    emb_u = jnp.take(u_w, pos_u, axis=0).astype(jnp.float32)
    emb_v = jnp.take(v_w, pos_v, axis=0).astype(jnp.float32)
    emb_n = jnp.take(v_w, neg_v, axis=0).astype(jnp.float32)
    score = jnp.sum(emb_u * emb_v, axis=1)
    score = jnp.clip(score, -10.0, 10.0)
    score = -jax.nn.log_sigmoid(score)
    neg = jnp.einsum('bkd,bd->bk', emb_n, emb_u)
    neg = jnp.clip(neg, -10.0, 10.0)
    neg = -jnp.mean(jax.nn.log_sigmoid(-neg), axis=1)
    return jnp.mean(score + neg), jnp.mean(score), jnp.mean(neg)


if __name__ == "__main__":
    emb_size, emb_dim = 256, 128        # lane-dense D (multiple of 128) per review
    B, K, TB = 16, 5, 8

    root = jax.random.PRNGKey(0)
    k_w, k_u, k_v, k_n, k_vw = jax.random.split(root, 5)

    model = SkipGramModelPallas(emb_size, emb_dim, k_w)

    pos_u = jax.random.randint(k_u, (B,), 0, emb_size, dtype=jnp.int32)
    pos_v = jax.random.randint(k_v, (B,), 0, emb_size, dtype=jnp.int32)
    neg_v = jax.random.randint(k_n, (B, K), 0, emb_size, dtype=jnp.int32)

    # --- module-faithful run (v_embeddings == 0, per __init__) ---
    total, pos, neg = model(pos_u, pos_v, neg_v, tb=TB)
    jax.block_until_ready(total)
    r_total, r_pos, r_neg = _reference_forward(model.u_weight, model.v_weight,
                                               pos_u, pos_v, neg_v)
    np.testing.assert_allclose(np.array(total), np.array(r_total), rtol=1e-5, atol=1e-5)
    np.testing.assert_allclose(np.array(pos), np.array(r_pos), rtol=1e-5, atol=1e-5)
    np.testing.assert_allclose(np.array(neg), np.array(r_neg), rtol=1e-5, atol=1e-5)

    # --- non-trivial numerics with a random v table ---
    v_rand = jax.random.normal(k_vw, (emb_size, emb_dim), jnp.float32) * 0.5
    t2, p2, n2 = skipgram_forward_pallas(model.u_weight, v_rand, pos_u, pos_v, neg_v, tb=TB)
    jax.block_until_ready(t2)
    rt2, rp2, rn2 = _reference_forward(model.u_weight, v_rand, pos_u, pos_v, neg_v)
    np.testing.assert_allclose(np.array(t2), np.array(rt2), rtol=1e-5, atol=1e-5)
    np.testing.assert_allclose(np.array(p2), np.array(rp2), rtol=1e-5, atol=1e-5)
    np.testing.assert_allclose(np.array(n2), np.array(rn2), rtol=1e-5, atol=1e-5)

    # --- ragged batch (B not a multiple of tb * num_core_groups): exercises masking ---
    Br = 13
    t3, p3, n3 = skipgram_forward_pallas(model.u_weight, v_rand,
                                         pos_u[:Br], pos_v[:Br], neg_v[:Br], tb=TB)
    jax.block_until_ready(t3)
    rt3, rp3, rn3 = _reference_forward(model.u_weight, v_rand,
                                       pos_u[:Br], pos_v[:Br], neg_v[:Br])
    np.testing.assert_allclose(np.array(t3), np.array(rt3), rtol=1e-5, atol=1e-5)
    np.testing.assert_allclose(np.array(p3), np.array(rp3), rtol=1e-5, atol=1e-5)
    np.testing.assert_allclose(np.array(n3), np.array(rn3), rtol=1e-5, atol=1e-5)

    # --- bf16 weight storage (halves HBM gather bytes on v6e/v7x; math stays f32) ---
    u_bf = model.u_weight.astype(jnp.bfloat16)
    v_bf = v_rand.astype(jnp.bfloat16)
    t4, p4, n4 = skipgram_forward_pallas(u_bf, v_bf, pos_u, pos_v, neg_v, tb=TB)
    jax.block_until_ready(t4)
    rt4, rp4, rn4 = _reference_forward(u_bf, v_bf, pos_u, pos_v, neg_v)
    np.testing.assert_allclose(np.array(t4), np.array(rt4), rtol=1e-4, atol=1e-4)
    np.testing.assert_allclose(np.array(p4), np.array(rp4), rtol=1e-4, atol=1e-4)
    np.testing.assert_allclose(np.array(n4), np.array(rn4), rtol=1e-4, atol=1e-4)

    print("KERNEL_OK")
</pallas_src>

<mosaic_0001>
module attributes {stable_mosaic.version = 11 : i64} {
  func.func @_skipgram_kernel(%arg0: i32, %arg1: i32, %arg2: memref<16xi32, #tpu.memory_space<smem>>, %arg3: memref<16xi32, #tpu.memory_space<smem>>, %arg4: memref<80xi32, #tpu.memory_space<smem>>, %arg5: memref<256x128xf32, #tpu.memory_space<any>>, %arg6: memref<256x128xf32, #tpu.memory_space<any>>, %arg7: memref<1x8x128xf32, #tpu.memory_space<vmem>>, %arg8: memref<8x128xf32, #tpu.memory_space<vmem>>, %arg9: memref<8x128xf32, #tpu.memory_space<vmem>>, %arg10: memref<5x8x128xf32, #tpu.memory_space<vmem>>, %arg11: memref<3x!tpu.dma_semaphore, #tpu.memory_space<semaphore_mem>>) attributes {dimension_semantics = [#tpu.dimension_semantics<parallel>, #tpu.dimension_semantics<arbitrary>], iteration_bounds = array<i64: 2, 1>, scalar_prefetch = 3 : i64, scratch_operands = 4 : i64, tpu.core_type = #tpu.core_type<tc>, window_params = [{}, {}, {transform_indices = @transform_2, window_bounds = array<i64: 1, 8, 128>}]} {
    %c1_i32 = arith.constant 1 : i32
    %0 = arith.muli %arg0, %c1_i32 : i32
    %1 = arith.addi %0, %arg1 : i32
    %c8_i32 = arith.constant 8 : i32
    %2 = arith.muli %1, %c8_i32 : i32
    %c0_i32 = arith.constant 0 : i32
    %c8_i32_0 = arith.constant 8 : i32
    %3 = arith.addi %c0_i32, %c8_i32_0 : i32
    %c1_i32_1 = arith.constant 1 : i32
    scf.for %arg12 = %c0_i32 to %3 step %c1_i32_1  : i32 {
      %c1_i32_85 = arith.constant 1 : i32
      %148 = arith.muli %arg12, %c1_i32_85 : i32
      %c0_i32_86 = arith.constant 0 : i32
      %149 = arith.addi %c0_i32_86, %148 : i32
      %150 = arith.addi %2, %149 : i32
      %151 = arith.index_cast %150 : i32 to index
      %152 = memref.load %arg2[%151] : memref<16xi32, #tpu.memory_space<smem>>
      %c0_i32_87 = arith.constant 0 : i32
      %c0_i32_88 = arith.constant 0 : i32
      %153 = tpu.memref_slice %arg5[%152, %c0_i32_88] : memref<256x128xf32, #tpu.memory_space<any>> -> memref<1x128xf32, #tpu.memory_space<any>>
      %154 = tpu.memref_squeeze %153 : memref<1x128xf32, #tpu.memory_space<any>> -> memref<128xf32, #tpu.memory_space<any>>
      %c0_i32_89 = arith.constant 0 : i32
      %155 = tpu.memref_slice %arg8[%149, %c0_i32_89] : memref<8x128xf32, #tpu.memory_space<vmem>> -> memref<1x128xf32, #tpu.memory_space<vmem>>
      %156 = tpu.memref_squeeze %155 : memref<1x128xf32, #tpu.memory_space<vmem>> -> memref<128xf32, #tpu.memory_space<vmem>>
      %157 = tpu.memref_slice %arg11[%c0_i32_87] : memref<3x!tpu.dma_semaphore, #tpu.memory_space<semaphore_mem>> -> memref<1x!tpu.dma_semaphore, #tpu.memory_space<semaphore_mem>>
      %158 = tpu.memref_squeeze %157 : memref<1x!tpu.dma_semaphore, #tpu.memory_space<semaphore_mem>> -> memref<!tpu.dma_semaphore, #tpu.memory_space<semaphore_mem>>
      tpu.enqueue_dma source(%154 : memref<128xf32, #tpu.memory_space<any>>) target(%156 : memref<128xf32, #tpu.memory_space<vmem>>) target_semaphore(%158 : memref<!tpu.dma_semaphore, #tpu.memory_space<semaphore_mem>>)
      %159 = arith.index_cast %150 : i32 to index
      %160 = memref.load %arg3[%159] : memref<16xi32, #tpu.memory_space<smem>>
      %c1_i32_90 = arith.constant 1 : i32
      %c0_i32_91 = arith.constant 0 : i32
      %161 = tpu.memref_slice %arg6[%160, %c0_i32_91] : memref<256x128xf32, #tpu.memory_space<any>> -> memref<1x128xf32, #tpu.memory_space<any>>
      %162 = tpu.memref_squeeze %161 : memref<1x128xf32, #tpu.memory_space<any>> -> memref<128xf32, #tpu.memory_space<any>>
      %c0_i32_92 = arith.constant 0 : i32
      %163 = tpu.memref_slice %arg9[%149, %c0_i32_92] : memref<8x128xf32, #tpu.memory_space<vmem>> -> memref<1x128xf32, #tpu.memory_space<vmem>>
      %164 = tpu.memref_squeeze %163 : memref<1x128xf32, #tpu.memory_space<vmem>> -> memref<128xf32, #tpu.memory_space<vmem>>
      %165 = tpu.memref_slice %arg11[%c1_i32_90] : memref<3x!tpu.dma_semaphore, #tpu.memory_space<semaphore_mem>> -> memref<1x!tpu.dma_semaphore, #tpu.memory_space<semaphore_mem>>
      %166 = tpu.memref_squeeze %165 : memref<1x!tpu.dma_semaphore, #tpu.memory_space<semaphore_mem>> -> memref<!tpu.dma_semaphore, #tpu.memory_space<semaphore_mem>>
      tpu.enqueue_dma source(%162 : memref<128xf32, #tpu.memory_space<any>>) target(%164 : memref<128xf32, #tpu.memory_space<vmem>>) target_semaphore(%166 : memref<!tpu.dma_semaphore, #tpu.memory_space<semaphore_mem>>)
    }
    %c8_i32_2 = arith.constant 8 : i32
    %c0_i32_3 = arith.constant 0 : i32
    %c8_i32_4 = arith.constant 8 : i32
    %4 = arith.addi %c0_i32_3, %c8_i32_4 : i32
    %c1_i32_5 = arith.constant 1 : i32
    scf.for %arg12 = %c0_i32_3 to %4 step %c1_i32_5  : i32 {
      %c1_i32_85 = arith.constant 1 : i32
      %148 = arith.muli %arg12, %c1_i32_85 : i32
      %c0_i32_86 = arith.constant 0 : i32
      %149 = arith.addi %c0_i32_86, %148 : i32
      %150 = arith.addi %2, %149 : i32
      %c5_i32_87 = arith.constant 5 : i32
      %151 = arith.muli %150, %c5_i32_87 : i32
      %c0_i32_88 = arith.constant 0 : i32
      %152 = arith.addi %151, %c0_i32_88 : i32
      %153 = arith.index_cast %152 : i32 to index
      %154 = memref.load %arg4[%153] : memref<80xi32, #tpu.memory_space<smem>>
      %c0_i32_89 = arith.constant 0 : i32
      %c2_i32_90 = arith.constant 2 : i32
      %c0_i32_91 = arith.constant 0 : i32
      %155 = tpu.memref_slice %arg6[%154, %c0_i32_91] : memref<256x128xf32, #tpu.memory_space<any>> -> memref<1x128xf32, #tpu.memory_space<any>>
      %156 = tpu.memref_squeeze %155 : memref<1x128xf32, #tpu.memory_space<any>> -> memref<128xf32, #tpu.memory_space<any>>
      %c0_i32_92 = arith.constant 0 : i32
      %157 = tpu.memref_slice %arg10[%c0_i32_89, %149, %c0_i32_92] : memref<5x8x128xf32, #tpu.memory_space<vmem>> -> memref<1x1x128xf32, #tpu.memory_space<vmem>>
      %158 = tpu.memref_squeeze %157 : memref<1x1x128xf32, #tpu.memory_space<vmem>> -> memref<128xf32, #tpu.memory_space<vmem>>
      %159 = tpu.memref_slice %arg11[%c2_i32_90] : memref<3x!tpu.dma_semaphore, #tpu.memory_space<semaphore_mem>> -> memref<1x!tpu.dma_semaphore, #tpu.memory_space<semaphore_mem>>
      %160 = tpu.memref_squeeze %159 : memref<1x!tpu.dma_semaphore, #tpu.memory_space<semaphore_mem>> -> memref<!tpu.dma_semaphore, #tpu.memory_space<semaphore_mem>>
      tpu.enqueue_dma source(%156 : memref<128xf32, #tpu.memory_space<any>>) target(%158 : memref<128xf32, #tpu.memory_space<vmem>>) target_semaphore(%160 : memref<!tpu.dma_semaphore, #tpu.memory_space<semaphore_mem>>)
    }
    %c8_i32_6 = arith.constant 8 : i32
    %c0_i32_7 = arith.constant 0 : i32
    %c8_i32_8 = arith.constant 8 : i32
    %5 = arith.addi %c0_i32_7, %c8_i32_8 : i32
    %c1_i32_9 = arith.constant 1 : i32
    scf.for %arg12 = %c0_i32_7 to %5 step %c1_i32_9  : i32 {
      %c1_i32_85 = arith.constant 1 : i32
      %148 = arith.muli %arg12, %c1_i32_85 : i32
      %c0_i32_86 = arith.constant 0 : i32
      %149 = arith.addi %c0_i32_86, %148 : i32
      %150 = arith.addi %2, %149 : i32
      %c5_i32_87 = arith.constant 5 : i32
      %151 = arith.muli %150, %c5_i32_87 : i32
      %c1_i32_88 = arith.constant 1 : i32
      %152 = arith.addi %151, %c1_i32_88 : i32
      %153 = arith.index_cast %152 : i32 to index
      %154 = memref.load %arg4[%153] : memref<80xi32, #tpu.memory_space<smem>>
      %c1_i32_89 = arith.constant 1 : i32
      %c2_i32_90 = arith.constant 2 : i32
      %c0_i32_91 = arith.constant 0 : i32
      %155 = tpu.memref_slice %arg6[%154, %c0_i32_91] : memref<256x128xf32, #tpu.memory_space<any>> -> memref<1x128xf32, #tpu.memory_space<any>>
      %156 = tpu.memref_squeeze %155 : memref<1x128xf32, #tpu.memory_space<any>> -> memref<128xf32, #tpu.memory_space<any>>
      %c0_i32_92 = arith.constant 0 : i32
      %157 = tpu.memref_slice %arg10[%c1_i32_89, %149, %c0_i32_92] : memref<5x8x128xf32, #tpu.memory_space<vmem>> -> memref<1x1x128xf32, #tpu.memory_space<vmem>>
      %158 = tpu.memref_squeeze %157 : memref<1x1x128xf32, #tpu.memory_space<vmem>> -> memref<128xf32, #tpu.memory_space<vmem>>
      %159 = tpu.memref_slice %arg11[%c2_i32_90] : memref<3x!tpu.dma_semaphore, #tpu.memory_space<semaphore_mem>> -> memref<1x!tpu.dma_semaphore, #tpu.memory_space<semaphore_mem>>
      %160 = tpu.memref_squeeze %159 : memref<1x!tpu.dma_semaphore, #tpu.memory_space<semaphore_mem>> -> memref<!tpu.dma_semaphore, #tpu.memory_space<semaphore_mem>>
      tpu.enqueue_dma source(%156 : memref<128xf32, #tpu.memory_space<any>>) target(%158 : memref<128xf32, #tpu.memory_space<vmem>>) target_semaphore(%160 : memref<!tpu.dma_semaphore, #tpu.memory_space<semaphore_mem>>)
    }
    %c8_i32_10 = arith.constant 8 : i32
    %c0_i32_11 = arith.constant 0 : i32
    %c8_i32_12 = arith.constant 8 : i32
    %6 = arith.addi %c0_i32_11, %c8_i32_12 : i32
    %c1_i32_13 = arith.constant 1 : i32
    scf.for %arg12 = %c0_i32_11 to %6 step %c1_i32_13  : i32 {
      %c1_i32_85 = arith.constant 1 : i32
      %148 = arith.muli %arg12, %c1_i32_85 : i32
      %c0_i32_86 = arith.constant 0 : i32
      %149 = arith.addi %c0_i32_86, %148 : i32
      %150 = arith.addi %2, %149 : i32
      %c5_i32_87 = arith.constant 5 : i32
      %151 = arith.muli %150, %c5_i32_87 : i32
      %c2_i32_88 = arith.constant 2 : i32
      %152 = arith.addi %151, %c2_i32_88 : i32
      %153 = arith.index_cast %152 : i32 to index
      %154 = memref.load %arg4[%153] : memref<80xi32, #tpu.memory_space<smem>>
      %c2_i32_89 = arith.constant 2 : i32
      %c2_i32_90 = arith.constant 2 : i32
      %c0_i32_91 = arith.constant 0 : i32
      %155 = tpu.memref_slice %arg6[%154, %c0_i32_91] : memref<256x128xf32, #tpu.memory_space<any>> -> memref<1x128xf32, #tpu.memory_space<any>>
      %156 = tpu.memref_squeeze %155 : memref<1x128xf32, #tpu.memory_space<any>> -> memref<128xf32, #tpu.memory_space<any>>
      %c0_i32_92 = arith.constant 0 : i32
      %157 = tpu.memref_slice %arg10[%c2_i32_89, %149, %c0_i32_92] : memref<5x8x128xf32, #tpu.memory_space<vmem>> -> memref<1x1x128xf32, #tpu.memory_space<vmem>>
      %158 = tpu.memref_squeeze %157 : memref<1x1x128xf32, #tpu.memory_space<vmem>> -> memref<128xf32, #tpu.memory_space<vmem>>
      %159 = tpu.memref_slice %arg11[%c2_i32_90] : memref<3x!tpu.dma_semaphore, #tpu.memory_space<semaphore_mem>> -> memref<1x!tpu.dma_semaphore, #tpu.memory_space<semaphore_mem>>
      %160 = tpu.memref_squeeze %159 : memref<1x!tpu.dma_semaphore, #tpu.memory_space<semaphore_mem>> -> memref<!tpu.dma_semaphore, #tpu.memory_space<semaphore_mem>>
      tpu.enqueue_dma source(%156 : memref<128xf32, #tpu.memory_space<any>>) target(%158 : memref<128xf32, #tpu.memory_space<vmem>>) target_semaphore(%160 : memref<!tpu.dma_semaphore, #tpu.memory_space<semaphore_mem>>)
    }
    %c8_i32_14 = arith.constant 8 : i32
    %c0_i32_15 = arith.constant 0 : i32
    %c8_i32_16 = arith.constant 8 : i32
    %7 = arith.addi %c0_i32_15, %c8_i32_16 : i32
    %c1_i32_17 = arith.constant 1 : i32
    scf.for %arg12 = %c0_i32_15 to %7 step %c1_i32_17  : i32 {
      %c1_i32_85 = arith.constant 1 : i32
      %148 = arith.muli %arg12, %c1_i32_85 : i32
      %c0_i32_86 = arith.constant 0 : i32
      %149 = arith.addi %c0_i32_86, %148 : i32
      %150 = arith.addi %2, %149 : i32
      %c5_i32_87 = arith.constant 5 : i32
      %151 = arith.muli %150, %c5_i32_87 : i32
      %c3_i32_88 = arith.constant 3 : i32
      %152 = arith.addi %151, %c3_i32_88 : i32
      %153 = arith.index_cast %152 : i32 to index
      %154 = memref.load %arg4[%153] : memref<80xi32, #tpu.memory_space<smem>>
      %c3_i32_89 = arith.constant 3 : i32
      %c2_i32_90 = arith.constant 2 : i32
      %c0_i32_91 = arith.constant 0 : i32
      %155 = tpu.memref_slice %arg6[%154, %c0_i32_91] : memref<256x128xf32, #tpu.memory_space<any>> -> memref<1x128xf32, #tpu.memory_space<any>>
      %156 = tpu.memref_squeeze %155 : memref<1x128xf32, #tpu.memory_space<any>> -> memref<128xf32, #tpu.memory_space<any>>
      %c0_i32_92 = arith.constant 0 : i32
      %157 = tpu.memref_slice %arg10[%c3_i32_89, %149, %c0_i32_92] : memref<5x8x128xf32, #tpu.memory_space<vmem>> -> memref<1x1x128xf32, #tpu.memory_space<vmem>>
      %158 = tpu.memref_squeeze %157 : memref<1x1x128xf32, #tpu.memory_space<vmem>> -> memref<128xf32, #tpu.memory_space<vmem>>
      %159 = tpu.memref_slice %arg11[%c2_i32_90] : memref<3x!tpu.dma_semaphore, #tpu.memory_space<semaphore_mem>> -> memref<1x!tpu.dma_semaphore, #tpu.memory_space<semaphore_mem>>
      %160 = tpu.memref_squeeze %159 : memref<1x!tpu.dma_semaphore, #tpu.memory_space<semaphore_mem>> -> memref<!tpu.dma_semaphore, #tpu.memory_space<semaphore_mem>>
      tpu.enqueue_dma source(%156 : memref<128xf32, #tpu.memory_space<any>>) target(%158 : memref<128xf32, #tpu.memory_space<vmem>>) target_semaphore(%160 : memref<!tpu.dma_semaphore, #tpu.memory_space<semaphore_mem>>)
    }
    %c8_i32_18 = arith.constant 8 : i32
    %c0_i32_19 = arith.constant 0 : i32
    %c8_i32_20 = arith.constant 8 : i32
    %8 = arith.addi %c0_i32_19, %c8_i32_20 : i32
    %c1_i32_21 = arith.constant 1 : i32
    scf.for %arg12 = %c0_i32_19 to %8 step %c1_i32_21  : i32 {
      %c1_i32_85 = arith.constant 1 : i32
      %148 = arith.muli %arg12, %c1_i32_85 : i32
      %c0_i32_86 = arith.constant 0 : i32
      %149 = arith.addi %c0_i32_86, %148 : i32
      %150 = arith.addi %2, %149 : i32
      %c5_i32_87 = arith.constant 5 : i32
      %151 = arith.muli %150, %c5_i32_87 : i32
      %c4_i32_88 = arith.constant 4 : i32
      %152 = arith.addi %151, %c4_i32_88 : i32
      %153 = arith.index_cast %152 : i32 to index
      %154 = memref.load %arg4[%153] : memref<80xi32, #tpu.memory_space<smem>>
      %c4_i32_89 = arith.constant 4 : i32
      %c2_i32_90 = arith.constant 2 : i32
      %c0_i32_91 = arith.constant 0 : i32
      %155 = tpu.memref_slice %arg6[%154, %c0_i32_91] : memref<256x128xf32, #tpu.memory_space<any>> -> memref<1x128xf32, #tpu.memory_space<any>>
      %156 = tpu.memref_squeeze %155 : memref<1x128xf32, #tpu.memory_space<any>> -> memref<128xf32, #tpu.memory_space<any>>
      %c0_i32_92 = arith.constant 0 : i32
      %157 = tpu.memref_slice %arg10[%c4_i32_89, %149, %c0_i32_92] : memref<5x8x128xf32, #tpu.memory_space<vmem>> -> memref<1x1x128xf32, #tpu.memory_space<vmem>>
      %158 = tpu.memref_squeeze %157 : memref<1x1x128xf32, #tpu.memory_space<vmem>> -> memref<128xf32, #tpu.memory_space<vmem>>
      %159 = tpu.memref_slice %arg11[%c2_i32_90] : memref<3x!tpu.dma_semaphore, #tpu.memory_space<semaphore_mem>> -> memref<1x!tpu.dma_semaphore, #tpu.memory_space<semaphore_mem>>
      %160 = tpu.memref_squeeze %159 : memref<1x!tpu.dma_semaphore, #tpu.memory_space<semaphore_mem>> -> memref<!tpu.dma_semaphore, #tpu.memory_space<semaphore_mem>>
      tpu.enqueue_dma source(%156 : memref<128xf32, #tpu.memory_space<any>>) target(%158 : memref<128xf32, #tpu.memory_space<vmem>>) target_semaphore(%160 : memref<!tpu.dma_semaphore, #tpu.memory_space<semaphore_mem>>)
    }
    %c8_i32_22 = arith.constant 8 : i32
    %c0_i32_23 = arith.constant 0 : i32
    %c8_i32_24 = arith.constant 8 : i32
    %9 = arith.addi %c0_i32_23, %c8_i32_24 : i32
    %c1_i32_25 = arith.constant 1 : i32
    scf.for %arg12 = %c0_i32_23 to %9 step %c1_i32_25  : i32 {
      %c0_i32_85 = arith.constant 0 : i32
      %c0_i32_86 = arith.constant 0 : i32
      %c0_i32_87 = arith.constant 0 : i32
      %c0_i32_88 = arith.constant 0 : i32
      %148 = tpu.memref_slice %arg5[%c0_i32_85, %c0_i32_88] : memref<256x128xf32, #tpu.memory_space<any>> -> memref<1x128xf32, #tpu.memory_space<any>>
      %149 = tpu.memref_squeeze %148 : memref<1x128xf32, #tpu.memory_space<any>> -> memref<128xf32, #tpu.memory_space<any>>
      %c0_i32_89 = arith.constant 0 : i32
      %150 = tpu.memref_slice %arg8[%c0_i32_86, %c0_i32_89] : memref<8x128xf32, #tpu.memory_space<vmem>> -> memref<1x128xf32, #tpu.memory_space<vmem>>
      %151 = tpu.memref_squeeze %150 : memref<1x128xf32, #tpu.memory_space<vmem>> -> memref<128xf32, #tpu.memory_space<vmem>>
      %152 = tpu.memref_slice %arg11[%c0_i32_87] : memref<3x!tpu.dma_semaphore, #tpu.memory_space<semaphore_mem>> -> memref<1x!tpu.dma_semaphore, #tpu.memory_space<semaphore_mem>>
      %153 = tpu.memref_squeeze %152 : memref<1x!tpu.dma_semaphore, #tpu.memory_space<semaphore_mem>> -> memref<!tpu.dma_semaphore, #tpu.memory_space<semaphore_mem>>
      tpu.wait_dma2 semaphore(%153 : memref<!tpu.dma_semaphore, #tpu.memory_space<semaphore_mem>>) src(%149 : memref<128xf32, #tpu.memory_space<any>>) dst(%151 : memref<128xf32, #tpu.memory_space<vmem>>)
      %c0_i32_90 = arith.constant 0 : i32
      %c0_i32_91 = arith.constant 0 : i32
      %c1_i32_92 = arith.constant 1 : i32
      %c0_i32_93 = arith.constant 0 : i32
      %154 = tpu.memref_slice %arg6[%c0_i32_90, %c0_i32_93] : memref<256x128xf32, #tpu.memory_space<any>> -> memref<1x128xf32, #tpu.memory_space<any>>
      %155 = tpu.memref_squeeze %154 : memref<1x128xf32, #tpu.memory_space<any>> -> memref<128xf32, #tpu.memory_space<any>>
      %c0_i32_94 = arith.constant 0 : i32
      %156 = tpu.memref_slice %arg9[%c0_i32_91, %c0_i32_94] : memref<8x128xf32, #tpu.memory_space<vmem>> -> memref<1x128xf32, #tpu.memory_space<vmem>>
      %157 = tpu.memref_squeeze %156 : memref<1x128xf32, #tpu.memory_space<vmem>> -> memref<128xf32, #tpu.memory_space<vmem>>
      %158 = tpu.memref_slice %arg11[%c1_i32_92] : memref<3x!tpu.dma_semaphore, #tpu.memory_space<semaphore_mem>> -> memref<1x!tpu.dma_semaphore, #tpu.memory_space<semaphore_mem>>
      %159 = tpu.memref_squeeze %158 : memref<1x!tpu.dma_semaphore, #tpu.memory_space<semaphore_mem>> -> memref<!tpu.dma_semaphore, #tpu.memory_space<semaphore_mem>>
      tpu.wait_dma2 semaphore(%159 : memref<!tpu.dma_semaphore, #tpu.memory_space<semaphore_mem>>) src(%155 : memref<128xf32, #tpu.memory_space<any>>) dst(%157 : memref<128xf32, #tpu.memory_space<vmem>>)
    }
    %c0 = arith.constant 0 : index
    %c0_26 = arith.constant 0 : index
    %10 = vector.load %arg8[%c0, %c0_26] : memref<8x128xf32, #tpu.memory_space<vmem>>, vector<8x128xf32>
    %c0_27 = arith.constant 0 : index
    %c0_28 = arith.constant 0 : index
    %11 = vector.load %arg9[%c0_27, %c0_28] : memref<8x128xf32, #tpu.memory_space<vmem>>, vector<8x128xf32>
    %12 = tpu.iota {dimensions = array<i32: 0>} : vector<8x1xi32>
    %13 = vector.broadcast %2 : i32 to vector<8x1xi32>
    %14 = arith.addi %13, %12 : vector<8x1xi32>
    %c16_i32 = arith.constant 16 : i32
    %15 = vector.broadcast %c16_i32 : i32 to vector<8x1xi32>
    %16 = arith.cmpi slt, %14, %15 : vector<8x1xi32>
    %17 = arith.mulf %10, %11 : vector<8x128xf32>
    %cst = arith.constant dense<0.000000e+00> : vector<8xf32>
    %18 = vector.multi_reduction <add>, %17, %cst [1] : vector<8x128xf32> to vector<8xf32>
    %19 = vector.shape_cast %18 : vector<8xf32> to vector<8x1xf32>
    %cst_29 = arith.constant -1.000000e+01 : f32
    %cst_30 = arith.constant 1.000000e+01 : f32
    %20 = vector.broadcast %cst_29 : f32 to vector<8x1xf32>
    %21 = arith.maximumf %20, %19 : vector<8x1xf32>
    %22 = vector.broadcast %cst_30 : f32 to vector<8x1xf32>
    %23 = arith.minimumf %22, %21 : vector<8x1xf32>
    %cst_31 = arith.constant 0.000000e+00 : f32
    %24 = vector.broadcast %cst_31 : f32 to vector<8x1xf32>
    %25 = arith.subf %24, %23 : vector<8x1xf32>
    %26 = math.exp %25 : vector<8x1xf32>
    %cst_32 = arith.constant 1.000000e+00 : f32
    %27 = vector.broadcast %cst_32 : f32 to vector<8x1xf32>
    %28 = arith.addf %27, %26 : vector<8x1xf32>
    %29 = math.log %28 : vector<8x1xf32>
    %cst_33 = arith.constant 0.000000e+00 : f32
    %30 = vector.broadcast %cst_33 : f32 to vector<8x1xf32>
    %31 = arith.select %16, %29, %30 : vector<8x1xi1>, vector<8x1xf32>
    %c0_i32_34 = arith.constant 0 : i32
    %c40_i32 = arith.constant 40 : i32
    %32 = arith.addi %c0_i32_34, %c40_i32 : i32
    %c1_i32_35 = arith.constant 1 : i32
    scf.for %arg12 = %c0_i32_34 to %32 step %c1_i32_35  : i32 {
      %c0_i32_85 = arith.constant 0 : i32
      %c0_i32_86 = arith.constant 0 : i32
      %c0_i32_87 = arith.constant 0 : i32
      %c2_i32_88 = arith.constant 2 : i32
      %c0_i32_89 = arith.constant 0 : i32
      %148 = tpu.memref_slice %arg6[%c0_i32_85, %c0_i32_89] : memref<256x128xf32, #tpu.memory_space<any>> -> memref<1x128xf32, #tpu.memory_space<any>>
      %149 = tpu.memref_squeeze %148 : memref<1x128xf32, #tpu.memory_space<any>> -> memref<128xf32, #tpu.memory_space<any>>
      %c0_i32_90 = arith.constant 0 : i32
      %150 = tpu.memref_slice %arg10[%c0_i32_86, %c0_i32_87, %c0_i32_90] : memref<5x8x128xf32, #tpu.memory_space<vmem>> -> memref<1x1x128xf32, #tpu.memory_space<vmem>>
      %151 = tpu.memref_squeeze %150 : memref<1x1x128xf32, #tpu.memory_space<vmem>> -> memref<128xf32, #tpu.memory_space<vmem>>
      %152 = tpu.memref_slice %arg11[%c2_i32_88] : memref<3x!tpu.dma_semaphore, #tpu.memory_space<semaphore_mem>> -> memref<1x!tpu.dma_semaphore, #tpu.memory_space<semaphore_mem>>
      %153 = tpu.memref_squeeze %152 : memref<1x!tpu.dma_semaphore, #tpu.memory_space<semaphore_mem>> -> memref<!tpu.dma_semaphore, #tpu.memory_space<semaphore_mem>>
      tpu.wait_dma2 semaphore(%153 : memref<!tpu.dma_semaphore, #tpu.memory_space<semaphore_mem>>) src(%149 : memref<128xf32, #tpu.memory_space<any>>) dst(%151 : memref<128xf32, #tpu.memory_space<vmem>>)
    }
    %cst_36 = arith.constant 0.000000e+00 : f32
    %33 = vector.broadcast %cst_36 : f32 to vector<8x1xf32>
    %c0_i32_37 = arith.constant 0 : i32
    %34 = arith.index_cast %c0_i32_37 : i32 to index
    %c0_38 = arith.constant 0 : index
    %c0_39 = arith.constant 0 : index
    %35 = vector.load %arg10[%34, %c0_38, %c0_39] : memref<5x8x128xf32, #tpu.memory_space<vmem>>, vector<1x8x128xf32>
    %36 = vector.shape_cast %35 : vector<1x8x128xf32> to vector<8x128xf32>
    %37 = arith.mulf %36, %10 : vector<8x128xf32>
    %cst_40 = arith.constant dense<0.000000e+00> : vector<8xf32>
    %38 = vector.multi_reduction <add>, %37, %cst_40 [1] : vector<8x128xf32> to vector<8xf32>
    %39 = vector.shape_cast %38 : vector<8xf32> to vector<8x1xf32>
    %cst_41 = arith.constant -1.000000e+01 : f32
    %cst_42 = arith.constant 1.000000e+01 : f32
    %40 = vector.broadcast %cst_41 : f32 to vector<8x1xf32>
    %41 = arith.maximumf %40, %39 : vector<8x1xf32>
    %42 = vector.broadcast %cst_42 : f32 to vector<8x1xf32>
    %43 = arith.minimumf %42, %41 : vector<8x1xf32>
    %44 = math.exp %43 : vector<8x1xf32>
    %cst_43 = arith.constant 1.000000e+00 : f32
    %45 = vector.broadcast %cst_43 : f32 to vector<8x1xf32>
    %46 = arith.addf %45, %44 : vector<8x1xf32>
    %47 = math.log %46 : vector<8x1xf32>
    %48 = arith.addf %33, %47 : vector<8x1xf32>
    %c1_i32_44 = arith.constant 1 : i32
    %49 = arith.index_cast %c1_i32_44 : i32 to index
    %c0_45 = arith.constant 0 : index
    %c0_46 = arith.constant 0 : index
    %50 = vector.load %arg10[%49, %c0_45, %c0_46] : memref<5x8x128xf32, #tpu.memory_space<vmem>>, vector<1x8x128xf32>
    %51 = vector.shape_cast %50 : vector<1x8x128xf32> to vector<8x128xf32>
    %52 = arith.mulf %51, %10 : vector<8x128xf32>
    %cst_47 = arith.constant dense<0.000000e+00> : vector<8xf32>
    %53 = vector.multi_reduction <add>, %52, %cst_47 [1] : vector<8x128xf32> to vector<8xf32>
    %54 = vector.shape_cast %53 : vector<8xf32> to vector<8x1xf32>
    %cst_48 = arith.constant -1.000000e+01 : f32
    %cst_49 = arith.constant 1.000000e+01 : f32
    %55 = vector.broadcast %cst_48 : f32 to vector<8x1xf32>
    %56 = arith.maximumf %55, %54 : vector<8x1xf32>
    %57 = vector.broadcast %cst_49 : f32 to vector<8x1xf32>
    %58 = arith.minimumf %57, %56 : vector<8x1xf32>
    %59 = math.exp %58 : vector<8x1xf32>
    %cst_50 = arith.constant 1.000000e+00 : f32
    %60 = vector.broadcast %cst_50 : f32 to vector<8x1xf32>
    %61 = arith.addf %60, %59 : vector<8x1xf32>
    %62 = math.log %61 : vector<8x1xf32>
    %63 = arith.addf %48, %62 : vector<8x1xf32>
    %c2_i32 = arith.constant 2 : i32
    %64 = arith.index_cast %c2_i32 : i32 to index
    %c0_51 = arith.constant 0 : index
    %c0_52 = arith.constant 0 : index
    %65 = vector.load %arg10[%64, %c0_51, %c0_52] : memref<5x8x128xf32, #tpu.memory_space<vmem>>, vector<1x8x128xf32>
    %66 = vector.shape_cast %65 : vector<1x8x128xf32> to vector<8x128xf32>
    %67 = arith.mulf %66, %10 : vector<8x128xf32>
    %cst_53 = arith.constant dense<0.000000e+00> : vector<8xf32>
    %68 = vector.multi_reduction <add>, %67, %cst_53 [1] : vector<8x128xf32> to vector<8xf32>
    %69 = vector.shape_cast %68 : vector<8xf32> to vector<8x1xf32>
    %cst_54 = arith.constant -1.000000e+01 : f32
    %cst_55 = arith.constant 1.000000e+01 : f32
    %70 = vector.broadcast %cst_54 : f32 to vector<8x1xf32>
    %71 = arith.maximumf %70, %69 : vector<8x1xf32>
    %72 = vector.broadcast %cst_55 : f32 to vector<8x1xf32>
    %73 = arith.minimumf %72, %71 : vector<8x1xf32>
    %74 = math.exp %73 : vector<8x1xf32>
    %cst_56 = arith.constant 1.000000e+00 : f32
    %75 = vector.broadcast %cst_56 : f32 to vector<8x1xf32>
    %76 = arith.addf %75, %74 : vector<8x1xf32>
    %77 = math.log %76 : vector<8x1xf32>
    %78 = arith.addf %63, %77 : vector<8x1xf32>
    %c3_i32 = arith.constant 3 : i32
    %79 = arith.index_cast %c3_i32 : i32 to index
    %c0_57 = arith.constant 0 : index
    %c0_58 = arith.constant 0 : index
    %80 = vector.load %arg10[%79, %c0_57, %c0_58] : memref<5x8x128xf32, #tpu.memory_space<vmem>>, vector<1x8x128xf32>
    %81 = vector.shape_cast %80 : vector<1x8x128xf32> to vector<8x128xf32>
    %82 = arith.mulf %81, %10 : vector<8x128xf32>
    %cst_59 = arith.constant dense<0.000000e+00> : vector<8xf32>
    %83 = vector.multi_reduction <add>, %82, %cst_59 [1] : vector<8x128xf32> to vector<8xf32>
    %84 = vector.shape_cast %83 : vector<8xf32> to vector<8x1xf32>
    %cst_60 = arith.constant -1.000000e+01 : f32
    %cst_61 = arith.constant 1.000000e+01 : f32
    %85 = vector.broadcast %cst_60 : f32 to vector<8x1xf32>
    %86 = arith.maximumf %85, %84 : vector<8x1xf32>
    %87 = vector.broadcast %cst_61 : f32 to vector<8x1xf32>
    %88 = arith.minimumf %87, %86 : vector<8x1xf32>
    %89 = math.exp %88 : vector<8x1xf32>
    %cst_62 = arith.constant 1.000000e+00 : f32
    %90 = vector.broadcast %cst_62 : f32 to vector<8x1xf32>
    %91 = arith.addf %90, %89 : vector<8x1xf32>
    %92 = math.log %91 : vector<8x1xf32>
    %93 = arith.addf %78, %92 : vector<8x1xf32>
    %c4_i32 = arith.constant 4 : i32
    %94 = arith.index_cast %c4_i32 : i32 to index
    %c0_63 = arith.constant 0 : index
    %c0_64 = arith.constant 0 : index
    %95 = vector.load %arg10[%94, %c0_63, %c0_64] : memref<5x8x128xf32, #tpu.memory_space<vmem>>, vector<1x8x128xf32>
    %96 = vector.shape_cast %95 : vector<1x8x128xf32> to vector<8x128xf32>
    %97 = arith.mulf %96, %10 : vector<8x128xf32>
    %cst_65 = arith.constant dense<0.000000e+00> : vector<8xf32>
    %98 = vector.multi_reduction <add>, %97, %cst_65 [1] : vector<8x128xf32> to vector<8xf32>
    %99 = vector.shape_cast %98 : vector<8xf32> to vector<8x1xf32>
    %cst_66 = arith.constant -1.000000e+01 : f32
    %cst_67 = arith.constant 1.000000e+01 : f32
    %100 = vector.broadcast %cst_66 : f32 to vector<8x1xf32>
    %101 = arith.maximumf %100, %99 : vector<8x1xf32>
    %102 = vector.broadcast %cst_67 : f32 to vector<8x1xf32>
    %103 = arith.minimumf %102, %101 : vector<8x1xf32>
    %104 = math.exp %103 : vector<8x1xf32>
    %cst_68 = arith.constant 1.000000e+00 : f32
    %105 = vector.broadcast %cst_68 : f32 to vector<8x1xf32>
    %106 = arith.addf %105, %104 : vector<8x1xf32>
    %107 = math.log %106 : vector<8x1xf32>
    %108 = arith.addf %93, %107 : vector<8x1xf32>
    %c5_i32 = arith.constant 5 : i32
    %cst_69 = arith.constant 2.000000e-01 : f32
    %109 = vector.broadcast %cst_69 : f32 to vector<8x1xf32>
    %110 = arith.mulf %108, %109 : vector<8x1xf32>
    %cst_70 = arith.constant 0.000000e+00 : f32
    %111 = vector.broadcast %cst_70 : f32 to vector<8x1xf32>
    %112 = arith.select %16, %110, %111 : vector<8x1xi1>, vector<8x1xf32>
    %113 = vector.shape_cast %31 : vector<8x1xf32> to vector<1x8x1xf32>
    %cst_71 = arith.constant dense<0.000000e+00> : vector<1xf32>
    %114 = vector.multi_reduction <add>, %113, %cst_71 [1, 2] : vector<1x8x1xf32> to vector<1xf32>
    %115 = vector.shape_cast %114 : vector<1xf32> to vector<1x1x1xf32>
    %116 = vector.extract %115[0, 0, 0] : f32 from vector<1x1x1xf32>
    %117 = vector.shape_cast %112 : vector<8x1xf32> to vector<1x8x1xf32>
    %cst_72 = arith.constant dense<0.000000e+00> : vector<1xf32>
    %118 = vector.multi_reduction <add>, %117, %cst_72 [1, 2] : vector<1x8x1xf32> to vector<1xf32>
    %119 = vector.shape_cast %118 : vector<1xf32> to vector<1x1x1xf32>
    %120 = vector.extract %119[0, 0, 0] : f32 from vector<1x1x1xf32>
    %121 = tpu.iota {dimensions = array<i32: 2>} : vector<1x8x128xi32>
    %122 = tpu.iota {dimensions = array<i32: 1>} : vector<1x8x128xi32>
    %c0_i32_73 = arith.constant 0 : i32
    %123 = vector.broadcast %c0_i32_73 : i32 to vector<1x8x128xi32>
    %124 = arith.cmpi eq, %122, %123 : vector<1x8x128xi32>
    %c0_i32_74 = arith.constant 0 : i32
    %125 = vector.broadcast %c0_i32_74 : i32 to vector<1x8x128xi32>
    %126 = arith.cmpi eq, %121, %125 : vector<1x8x128xi32>
    %127 = arith.andi %124, %126 : vector<1x8x128xi1>
    %128 = arith.extui %127 : vector<1x8x128xi1> to vector<1x8x128xi32>
    %129 = arith.sitofp %128 : vector<1x8x128xi32> to vector<1x8x128xf32>
    %c0_i32_75 = arith.constant 0 : i32
    %130 = vector.broadcast %c0_i32_75 : i32 to vector<1x8x128xi32>
    %131 = arith.cmpi eq, %122, %130 : vector<1x8x128xi32>
    %c1_i32_76 = arith.constant 1 : i32
    %132 = vector.broadcast %c1_i32_76 : i32 to vector<1x8x128xi32>
    %133 = arith.cmpi eq, %121, %132 : vector<1x8x128xi32>
    %134 = arith.andi %131, %133 : vector<1x8x128xi1>
    %135 = arith.extui %134 : vector<1x8x128xi1> to vector<1x8x128xi32>
    %136 = arith.sitofp %135 : vector<1x8x128xi32> to vector<1x8x128xf32>
    %137 = vector.broadcast %116 : f32 to vector<1x8x128xf32>
    %138 = arith.mulf %129, %137 : vector<1x8x128xf32>
    %139 = vector.broadcast %120 : f32 to vector<1x8x128xf32>
    %140 = arith.mulf %136, %139 : vector<1x8x128xf32>
    %141 = arith.addf %138, %140 : vector<1x8x128xf32>
    %c0_i32_77 = arith.constant 0 : i32
    %142 = arith.cmpi eq, %arg1, %c0_i32_77 : i32
    %143 = arith.extui %142 : i1 to i32
    %c0_i32_78 = arith.constant 0 : i32
    %144 = arith.cmpi ne, %143, %c0_i32_78 : i32
    scf.if %144 {
      %cst_85 = arith.constant 0.000000e+00 : f32
      %148 = vector.broadcast %cst_85 : f32 to vector<1x8x128xf32>
      %c0_86 = arith.constant 0 : index
      %c0_87 = arith.constant 0 : index
      %c0_88 = arith.constant 0 : index
      %149 = vector.load %arg7[%c0_86, %c0_87, %c0_88] : memref<1x8x128xf32, #tpu.memory_space<vmem>>, vector<1x8x128xf32>
      tpu.vector_store %arg7[%c0_86, %c0_87, %c0_88], %148 {strides = array<i32>} : memref<1x8x128xf32, #tpu.memory_space<vmem>>, vector<1x8x128xf32>,
    } else {
    }
    %c0_79 = arith.constant 0 : index
    %c0_80 = arith.constant 0 : index
    %c0_81 = arith.constant 0 : index
    %145 = vector.load %arg7[%c0_79, %c0_80, %c0_81] : memref<1x8x128xf32, #tpu.memory_space<vmem>>, vector<1x8x128xf32>
    %146 = arith.addf %145, %141 : vector<1x8x128xf32>
    %c0_82 = arith.constant 0 : index
    %c0_83 = arith.constant 0 : index
    %c0_84 = arith.constant 0 : index
    %147 = vector.load %arg7[%c0_82, %c0_83, %c0_84] : memref<1x8x128xf32, #tpu.memory_space<vmem>>, vector<1x8x128xf32>
    tpu.vector_store %arg7[%c0_82, %c0_83, %c0_84], %146 {strides = array<i32>} : memref<1x8x128xf32, #tpu.memory_space<vmem>>, vector<1x8x128xf32>,
    return
  }
  func.func @transform_2(%arg0: i32, %arg1: i32, %arg2: memref<16xi32, #tpu.memory_space<smem>>, %arg3: memref<16xi32, #tpu.memory_space<smem>>, %arg4: memref<80xi32, #tpu.memory_space<smem>>) -> (i32, i32, i32) {
    %c0_i32 = arith.constant 0 : i32
    %c0_i32_0 = arith.constant 0 : i32
    %c0_i32_1 = arith.constant 0 : i32
    return %arg0, %c0_i32, %c0_i32_0 : i32, i32, i32
  }
}

</mosaic_0001>

<llo_original>
// kernel: tpu_custom_call.1
$region0: #{tpu_custom_call.1}
  #allocation0 [shape = 'u32[]', space=smem, size = 0x4, offset = 0x4, fixed_abs, tag = 'smem constant byte address 0x4 - core index']
  #allocation1 [shape = 'u32[144,128]{1,0:T(1,128)}', space=vmem, size = 0x12000, scoped, tag = 'internal scratch']
  #allocation2 [shape = 'f32[8,128]{1,0:T(8,128)}', space=vmem, size = 0x1000, scoped, tag = 'scratch operand']
  #allocation3 [shape = 'f32[8,128]{1,0:T(8,128)}', space=vmem, size = 0x1000, scoped, tag = 'scratch operand']
  #allocation4 [shape = 'f32[5,8,128]{2,1,0:T(8,128)}', space=vmem, size = 0x5000, scoped, tag = 'scratch operand']
  #allocation5 [shape = 's32[3]{0}', space=sflag, size = 0xc, scoped, tag = 'scratch operand']
  #allocation6 [shape = 's32[1]{0}', space=sflag, size = 0x4, scoped, tag = 'scoped memory for tpu_custom_call.1']
  #allocation7 [shape = 'u8[512]{0}', space=smem, size = 0x200, scoped, tag = 'prefetched SMEM operand 0']
  #allocation8 [shape = 'u8[512]{0}', space=smem, size = 0x200, scoped, tag = 'prefetched SMEM operand 1']
  #allocation9 [shape = 'u8[512]{0}', space=smem, size = 0x200, scoped, tag = 'prefetched SMEM operand 2']
  #allocation12 [shape = 's32[]', space=sflag, size = 0x4, offset = 0, fixed_abs, tag = 'sflag constant byte address 0x0 - dummy sync flag']
  #allocation13 [shape = 's32[]', space=sflag, size = 0x4, offset = 0, fixed_abs, tag = 'sflag constant byte address 0x0 - dummy sync flag']
  #allocation14 [shape = 'u32[]', space=smem, size = 0x4, offset = 0x44, fixed_abs, tag = 'smem constant byte address 0x44 - assertion arg 0']
  #allocation15 [shape = 'u32[]', space=smem, size = 0x4, offset = 0x48, fixed_abs, tag = 'smem constant byte address 0x48 - assertion arg 1']
  #allocation16 [shape = 's32[]', space=sflag, size = 0x4, offset = 0, fixed_abs, tag = 'sflag constant byte address 0x0 - dummy sync flag']
  #allocation17 [shape = 's32[]', space=sflag, size = 0x4, offset = 0, fixed_abs, tag = 'sflag constant byte address 0x0 - dummy sync flag']
  #allocation18 [shape = 's32[]', space=sflag, size = 0x4, offset = 0, fixed_abs, tag = 'sflag constant byte address 0x0 - dummy sync flag']
  #allocation19 [shape = 's32[]', space=sflag, size = 0x4, offset = 0, fixed_abs, tag = 'sflag constant byte address 0x0 - dummy sync flag']
  #allocation20 [shape = 's32[]', space=sflag, size = 0x4, offset = 0, fixed_abs, tag = 'sflag constant byte address 0x0 - dummy sync flag']
  #allocation21 [shape = 's32[]', space=sflag, size = 0x4, offset = 0, fixed_abs, tag = 'sflag constant byte address 0x0 - dummy sync flag']
  #allocation22 [shape = 's32[]', space=sflag, size = 0x4, offset = 0, fixed_abs, tag = 'sflag constant byte address 0x0 - dummy sync flag']
  #allocation23 [shape = 's32[]', space=sflag, size = 0x4, offset = 0, fixed_abs, tag = 'sflag constant byte address 0x0 - dummy sync flag']
  #allocation24 [shape = 's32[]', space=sflag, size = 0x4, offset = 0, fixed_abs, tag = 'sflag constant byte address 0x0 - dummy sync flag']
  #allocation25 [shape = 's32[]', space=sflag, size = 0x4, offset = 0, fixed_abs, tag = 'sflag constant byte address 0x0 - dummy sync flag']
  #allocation26 [shape = 's32[]', space=sflag, size = 0x4, offset = 0, fixed_abs, tag = 'sflag constant byte address 0x0 - dummy sync flag']
  #allocation27 [shape = 's32[]', space=sflag, size = 0x4, offset = 0, fixed_abs, tag = 'sflag constant byte address 0x0 - dummy sync flag']
  %s0 = inlined_call_operand.hbm [shape: s32[16], index: 0, kind: input, shape index: {}]
  %s1 = inlined_call_operand.vmem [shape: s32[16], index: 1, kind: input, shape index: {}]
  %s2 = inlined_call_operand.vmem [shape: s32[80], index: 2, kind: input, shape index: {}]
  %s3 = inlined_call_operand.hbm [shape: f32[256,128], index: 3, kind: input, shape index: {}]
  %s4 = inlined_call_operand.hbm [shape: f32[256,128], index: 4, kind: input, shape index: {}]
  %s5 = inlined_call_operand.hbm [shape: f32[2,8,128], index: 5, kind: output, shape index: {}]
  %s6 = sld [smem:[#allocation0]]
  $region113: #{tpu_custom_call.1} parent=0
    _
  %s8 = ssub.s32 1, %s6
  %s9 = scalar_select 0, %s8, %s6
  %11 = dma.hbm_to_smem %s0, 16, [#allocation7], [#allocation6]
  %s12 = sshll.u32 %s1, 4
  %s13 = int_to_ptr.vmem [resolvable:$true] %s12
  %15 = dma.vmem_to_smem %s13, 16, [#allocation8], [#allocation6]
  %s16 = sshll.u32 %s2, 4
  %s17 = int_to_ptr.vmem [resolvable:$true] %s16
  %19 = dma.vmem_to_smem %s17, 16, [#allocation9], [#allocation6]
  %20 = dma.done [#allocation6], 48
  %21 = sfence
  $region1: #{tpu_custom_call.1} parent=0
    #allocation10 [shape = 'u8[8192]{0}', space=vmem, size = 0x2000, scoped, tag = 'output window, operand 0']
    #allocation11 [shape = 's32[2]{0}', space=sflag, size = 0x8, scoped, tag = 'scoped memory for tpu_custom_call.1']
    %22 = vsyncpa [#allocation11], 0
    %s23 = scalar_lea.sflag [#allocation11], 1
    %24 = vsyncpa %s23, 0
    loop: start=0, step=1, limit=3
    $region2: #{tpu_custom_call.1} parent=1 // loop_pre_header
      _
    $region3: #{tpu_custom_call.1} parent=1 // loop_header
      %s26 = sphi 0, %s30
      %p27 = scmp.ge.s32.totalorder %s26, 3
      %s32 = sphi 0, %s42
      %s33 = sphi 0, %s38
      %s34 = sphi 0, %s32
      %s35 = sphi 0, %s33
      %s45 = sphi 0, %s47
      %s48 = sphi 0, %s45
      %s58 = sphi 0, %s48
    $region4: #{tpu_custom_call.1} parent=1 // loop_header_branch
      %29 = sbr.rel (%p27) target = $region8
    $region5: #{tpu_custom_call.1} parent=1 // loop_body
      %s31 = ssub.s32 %s26, 1
      %s36 = sadd.s32 1, %s33
      %p37 = scmp.ge.s32.totalorder %s36, 1
      %s38 = scalar_select %p37, 0, %s36
      %s39 = sadd.s32 1, %s32
      %s40 = scalar_select %p37, %s39, %s32
      %p41 = scmp.ge.s32.totalorder %s40, 2
      %s42 = scalar_select %p41, 0, %s40
      %s43 = ssub.s32 %s32, %s42
      %p44 = scmp.eq.s32.totalorder %s43, 0
      %s46 = sadd.s32 %s45, 1
      %s47 = scalar_select %p44, %s45, %s46
      %p49 = pneg %p44
      %p50 = scmp.eq.s32.totalorder %s26, 1
      %p51 = por %p49, %p50
      %p52 = scmp.ne.s32.totalorder %s45, %s48
      %p53 = scmp.eq.s32.totalorder %s26, 0
      %p54 = por %p52, %p53
      %p55 = scmp.ne.s32.totalorder %s45, %s48
      %p56 = scmp.eq.s32.totalorder %s31, 1
      %p57 = por %p55, %p56
      %p59 = scmp.ne.s32.totalorder %s48, %s58
      %p60 = scmp.eq.s32.totalorder %s31, 0
      %p61 = por %p59, %p60
      %p62 = scmp.lt.s32.totalorder %s26, 2
      // Predicated region
      $region9: #{tpu_custom_call.1} parent=5 // pred_check
        %p63 = pneg %p62
      $region10: #{tpu_custom_call.1} parent=5 // pred_check_branch
        %65 = sbr.rel (%p63) target = $region12
      $region11: #{tpu_custom_call.1} parent=5 // pred_region
        %p66 = pneg %p54
        %p67 = pneg %p51
        %s68 = sand.u32 %s45, 1
        %s69 = scalar_lea.sflag [#allocation11], %s68
        %s70 = sand.u32 %s45, 1
        %s71 = smul.addr %s70, 8
        %s72 = scalar_lea.vmem [#allocation10], %s71
        %s73 = sadd.s32 %s32, %s33
        %s74 = smul.u32 %s73, 8
        loop: start=0, step=1, limit=8
        $region13: #{tpu_custom_call.1} parent=11 // loop_pre_header
          _
        $region14: #{tpu_custom_call.1} parent=11 // loop_header
          %s76 = sphi 0, %s80
          %p77 = scmp.ge.s32.totalorder %s76, 8
        $region15: #{tpu_custom_call.1} parent=11 // loop_header_branch
          %79 = sbr.rel (%p77) target = $region19
        $region16: #{tpu_custom_call.1} parent=11 // loop_body
          %s81 = sadd.s32 %s74, %s76
          %s82 = sld [smem:[#allocation7 + %s81]]
          %s83 = smul.addr %s82, 16
          %s84 = scalar_lea.hbm %s3, %s83
          %s85 = scalar_lea.vmem [#allocation2], %s76
          // Predicated region
          $region20: #{tpu_custom_call.1} parent=16 // pred_check
            _
          $region21: #{tpu_custom_call.1} parent=16 // pred_check_branch
            %87 = sbr.rel target = $region23
          $region22: #{tpu_custom_call.1} parent=16 // pred_region
            %88 = sst [smem:[#allocation14]] [#allocation13]
            %89 = sst [smem:[#allocation15]] [#allocation12]
          $region23: #{tpu_custom_call.1} parent=16 // pred_fallthru
            _
          %91 = shalt.err (0)
          %s93 = sshll.u32 %s85, 4
          %s94 = int_to_ptr.vmem [resolvable:$true] %s93
          %96 = dma.hbm_to_vmem [thread:$0]  %s84, 16, %s94, [#allocation5]
          %s97 = sld [smem:[#allocation8 + %s81]]
          %s98 = smul.addr %s97, 16
          %s99 = scalar_lea.hbm %s4, %s98
          %s100 = scalar_lea.vmem [#allocation3], %s76
          %s101 = scalar_lea.sflag [#allocation5], 1
          // Predicated region
          $region24: #{tpu_custom_call.1} parent=16 // pred_check
            _
          $region25: #{tpu_custom_call.1} parent=16 // pred_check_branch
            %103 = sbr.rel target = $region27
          $region26: #{tpu_custom_call.1} parent=16 // pred_region
            %104 = sst [smem:[#allocation14]] [#allocation17]
            %105 = sst [smem:[#allocation15]] [#allocation16]
          $region27: #{tpu_custom_call.1} parent=16 // pred_fallthru
            _
          %107 = shalt.err (0)
          %s109 = sshll.u32 %s100, 4
          %s110 = int_to_ptr.vmem [resolvable:$true] %s109
          %112 = dma.hbm_to_vmem [thread:$0]  %s99, 16, %s110, %s101
        $region17: #{tpu_custom_call.1} parent=11 // loop_footer
          %s80 = sadd.s32 1, %s76
        $region18: #{tpu_custom_call.1} parent=11 // loop_footer_branch
          %75 = sbr.rel target = $region14
        $region19: #{tpu_custom_call.1} parent=11 // loop_exit
          _
        loop: start=0, step=1, limit=8
        $region28: #{tpu_custom_call.1} parent=11 // loop_pre_header
          _
        $region29: #{tpu_custom_call.1} parent=11 // loop_header
          %s114 = sphi 0, %s118
          %p115 = scmp.ge.s32.totalorder %s114, 8
        $region30: #{tpu_custom_call.1} parent=11 // loop_header_branch
          %117 = sbr.rel (%p115) target = $region34
        $region31: #{tpu_custom_call.1} parent=11 // loop_body
          %s119 = sadd.s32 %s74, %s114
          %s120 = smul.u32 %s119, 5
          %s121 = sld [smem:[#allocation9 + %s120]]
          %s122 = smul.addr %s121, 16
          %s123 = scalar_lea.hbm %s4, %s122
          %s124 = scalar_lea.vmem [#allocation4], %s114
          %s125 = scalar_lea.sflag [#allocation5], 2
          // Predicated region
          $region35: #{tpu_custom_call.1} parent=31 // pred_check
            _
          $region36: #{tpu_custom_call.1} parent=31 // pred_check_branch
            %127 = sbr.rel target = $region38
          $region37: #{tpu_custom_call.1} parent=31 // pred_region
            %128 = sst [smem:[#allocation14]] [#allocation19]
            %129 = sst [smem:[#allocation15]] [#allocation18]
          $region38: #{tpu_custom_call.1} parent=31 // pred_fallthru
            _
          %131 = shalt.err (0)
          %s133 = sshll.u32 %s124, 4
          %s134 = int_to_ptr.vmem [resolvable:$true] %s133
          %136 = dma.hbm_to_vmem [thread:$0]  %s123, 16, %s134, %s125
        $region32: #{tpu_custom_call.1} parent=11 // loop_footer
          %s118 = sadd.s32 1, %s114
        $region33: #{tpu_custom_call.1} parent=11 // loop_footer_branch
          %113 = sbr.rel target = $region29
        $region34: #{tpu_custom_call.1} parent=11 // loop_exit
          _
        loop: start=0, step=1, limit=8
        $region39: #{tpu_custom_call.1} parent=11 // loop_pre_header
          _
        $region40: #{tpu_custom_call.1} parent=11 // loop_header
          %s138 = sphi 0, %s142
          %p139 = scmp.ge.s32.totalorder %s138, 8
        $region41: #{tpu_custom_call.1} parent=11 // loop_header_branch
          %141 = sbr.rel (%p139) target = $region45
        $region42: #{tpu_custom_call.1} parent=11 // loop_body
          %s143 = sadd.s32 %s74, %s138
          %s144 = smul.u32 %s143, 5
          %s145 = sadd.s32 %s144, 1
          %s146 = sld [smem:[#allocation9 + %s145]]
          %s147 = smul.addr %s146, 16
          %s148 = scalar_lea.hbm %s4, %s147
          %s149 = sadd.s32 %s138, 8
          %s150 = scalar_lea.vmem [#allocation4], %s149
          %s151 = scalar_lea.sflag [#allocation5], 2
          // Predicated region
          $region46: #{tpu_custom_call.1} parent=42 // pred_check
            _
          $region47: #{tpu_custom_call.1} parent=42 // pred_check_branch
            %153 = sbr.rel target = $region49
          $region48: #{tpu_custom_call.1} parent=42 // pred_region
            %154 = sst [smem:[#allocation14]] [#allocation21]
            %155 = sst [smem:[#allocation15]] [#allocation20]
          $region49: #{tpu_custom_call.1} parent=42 // pred_fallthru
            _
          %157 = shalt.err (0)
          %s159 = sshll.u32 %s150, 4
          %s160 = int_to_ptr.vmem [resolvable:$true] %s159
          %162 = dma.hbm_to_vmem [thread:$0]  %s148, 16, %s160, %s151
        $region43: #{tpu_custom_call.1} parent=11 // loop_footer
          %s142 = sadd.s32 1, %s138
        $region44: #{tpu_custom_call.1} parent=11 // loop_footer_branch
          %137 = sbr.rel target = $region40
        $region45: #{tpu_custom_call.1} parent=11 // loop_exit
          _
        loop: start=0, step=1, limit=8
        $region50: #{tpu_custom_call.1} parent=11 // loop_pre_header
          _
        $region51: #{tpu_custom_call.1} parent=11 // loop_header
          %s164 = sphi 0, %s168
          %p165 = scmp.ge.s32.totalorder %s164, 8
        $region52: #{tpu_custom_call.1} parent=11 // loop_header_branch
          %167 = sbr.rel (%p165) target = $region56
        $region53: #{tpu_custom_call.1} parent=11 // loop_body
          %s169 = sadd.s32 %s74, %s164
          %s170 = smul.u32 %s169, 5
          %s171 = sadd.s32 %s170, 2
          %s172 = sld [smem:[#allocation9 + %s171]]
          %s173 = smul.addr %s172, 16
          %s174 = scalar_lea.hbm %s4, %s173
          %s175 = sadd.s32 %s164, 16
          %s176 = scalar_lea.vmem [#allocation4], %s175
          %s177 = scalar_lea.sflag [#allocation5], 2
          // Predicated region
          $region57: #{tpu_custom_call.1} parent=53 // pred_check
            _
          $region58: #{tpu_custom_call.1} parent=53 // pred_check_branch
            %179 = sbr.rel target = $region60
          $region59: #{tpu_custom_call.1} parent=53 // pred_region
            %180 = sst [smem:[#allocation14]] [#allocation23]
            %181 = sst [smem:[#allocation15]] [#allocation22]
          $region60: #{tpu_custom_call.1} parent=53 // pred_fallthru
            _
          %183 = shalt.err (0)
          %s185 = sshll.u32 %s176, 4
          %s186 = int_to_ptr.vmem [resolvable:$true] %s185
          %188 = dma.hbm_to_vmem [thread:$0]  %s174, 16, %s186, %s177
        $region54: #{tpu_custom_call.1} parent=11 // loop_footer
          %s168 = sadd.s32 1, %s164
        $region55: #{tpu_custom_call.1} parent=11 // loop_footer_branch
          %163 = sbr.rel target = $region51
        $region56: #{tpu_custom_call.1} parent=11 // loop_exit
          _
        loop: start=0, step=1, limit=8
        $region61: #{tpu_custom_call.1} parent=11 // loop_pre_header
          _
        $region62: #{tpu_custom_call.1} parent=11 // loop_header
          %s190 = sphi 0, %s194
          %p191 = scmp.ge.s32.totalorder %s190, 8
        $region63: #{tpu_custom_call.1} parent=11 // loop_header_branch
          %193 = sbr.rel (%p191) target = $region67
        $region64: #{tpu_custom_call.1} parent=11 // loop_body
          %s195 = sadd.s32 %s74, %s190
          %s196 = smul.u32 %s195, 5
          %s197 = sadd.s32 %s196, 3
          %s198 = sld [smem:[#allocation9 + %s197]]
          %s199 = smul.addr %s198, 16
          %s200 = scalar_lea.hbm %s4, %s199
          %s201 = sadd.s32 %s190, 24
          %s202 = scalar_lea.vmem [#allocation4], %s201
          %s203 = scalar_lea.sflag [#allocation5], 2
          // Predicated region
          $region68: #{tpu_custom_call.1} parent=64 // pred_check
            _
          $region69: #{tpu_custom_call.1} parent=64 // pred_check_branch
            %205 = sbr.rel target = $region71
          $region70: #{tpu_custom_call.1} parent=64 // pred_region
            %206 = sst [smem:[#allocation14]] [#allocation25]
            %207 = sst [smem:[#allocation15]] [#allocation24]
          $region71: #{tpu_custom_call.1} parent=64 // pred_fallthru
            _
          %209 = shalt.err (0)
          %s211 = sshll.u32 %s202, 4
          %s212 = int_to_ptr.vmem [resolvable:$true] %s211
          %214 = dma.hbm_to_vmem [thread:$0]  %s200, 16, %s212, %s203
        $region65: #{tpu_custom_call.1} parent=11 // loop_footer
          %s194 = sadd.s32 1, %s190
        $region66: #{tpu_custom_call.1} parent=11 // loop_footer_branch
          %189 = sbr.rel target = $region62
        $region67: #{tpu_custom_call.1} parent=11 // loop_exit
          _
        loop: start=0, step=1, limit=8
        $region72: #{tpu_custom_call.1} parent=11 // loop_pre_header
          _
        $region73: #{tpu_custom_call.1} parent=11 // loop_header
          %s216 = sphi 0, %s220
          %p217 = scmp.ge.s32.totalorder %s216, 8
        $region74: #{tpu_custom_call.1} parent=11 // loop_header_branch
          %219 = sbr.rel (%p217) target = $region78
        $region75: #{tpu_custom_call.1} parent=11 // loop_body
          %s221 = sadd.s32 %s74, %s216
          %s222 = smul.u32 %s221, 5
          %s223 = sadd.s32 %s222, 4
          %s224 = sld [smem:[#allocation9 + %s223]]
          %s225 = smul.addr %s224, 16
          %s226 = scalar_lea.hbm %s4, %s225
          %s227 = sadd.s32 %s216, 32
          %s228 = scalar_lea.vmem [#allocation4], %s227
          %s229 = scalar_lea.sflag [#allocation5], 2
          // Predicated region
          $region79: #{tpu_custom_call.1} parent=75 // pred_check
            _
          $region80: #{tpu_custom_call.1} parent=75 // pred_check_branch
            %231 = sbr.rel target = $region82
          $region81: #{tpu_custom_call.1} parent=75 // pred_region
            %232 = sst [smem:[#allocation14]] [#allocation27]
            %233 = sst [smem:[#allocation15]] [#allocation26]
          $region82: #{tpu_custom_call.1} parent=75 // pred_fallthru
            _
          %235 = shalt.err (0)
          %s237 = sshll.u32 %s228, 4
          %s238 = int_to_ptr.vmem [resolvable:$true] %s237
          %240 = dma.hbm_to_vmem [thread:$0]  %s226, 16, %s238, %s229
        $region76: #{tpu_custom_call.1} parent=11 // loop_footer
          %s220 = sadd.s32 1, %s216
        $region77: #{tpu_custom_call.1} parent=11 // loop_footer_branch
          %215 = sbr.rel target = $region73
        $region78: #{tpu_custom_call.1} parent=11 // loop_exit
          _
        loop: start=0, step=1, limit=8
        $region83: #{tpu_custom_call.1} parent=11 // loop_pre_header
          _
        $region84: #{tpu_custom_call.1} parent=11 // loop_header
          %s242 = sphi 0, %s246
          %p243 = scmp.ge.s32.totalorder %s242, 8
        $region85: #{tpu_custom_call.1} parent=11 // loop_header_branch
          %245 = sbr.rel (%p243) target = $region89
        $region86: #{tpu_custom_call.1} parent=11 // loop_body
          %248 = dma.done [#allocation5], 16
          %s249 = scalar_lea.sflag [#allocation5], 1
          %251 = dma.done %s249, 16
        $region87: #{tpu_custom_call.1} parent=11 // loop_footer
          %s246 = sadd.s32 1, %s242
        $region88: #{tpu_custom_call.1} parent=11 // loop_footer_branch
          %241 = sbr.rel target = $region84
        $region89: #{tpu_custom_call.1} parent=11 // loop_exit
          _
        %v252 = vld [vmem:[#allocation2] sm:$0xff]
        %v253 = vld [vmem:[#allocation3] sm:$0xff]
        %v254 = vlaneseq
        %v255 = vshrl.u32 %v254, 7
        %v256 = vstv %s74
        %v257 = vadd.s32 %v256, %v255
        %vm258 = vcmp.lt.s32.totalorder %v257, 16
        %v259 = vmul.f32 %v252, %v253
        %260 = vadd.xlane.f32.xlu0 %v259
        %v261 = vpop.xlane.xlu0 %260
        %v262 = vmax.f32 %v261, -10.0
        %v263 = vmin.f32 %v262, 10.0
        %v264 = vsub.f32 0.0, %v263
        %v265 = vmul.f32 %v264, 1.442695
        %v266 = vpow.pop %v265
        %v267 = vadd.f32 %v266, 1.0
        %v268 = vlog2.pop %v267
        %v269 = vmul.f32 %v268, 0.6931472
        %v270 = vsel %vm258, %v269, 0.0
        loop: start=0, step=1, limit=40
        $region90: #{tpu_custom_call.1} parent=11 // loop_pre_header
          _
        $region91: #{tpu_custom_call.1} parent=11 // loop_header
          %s272 = sphi 0, %s276
          %p273 = scmp.ge.s32.totalorder %s272, 40
        $region92: #{tpu_custom_call.1} parent=11 // loop_header_branch
          %275 = sbr.rel (%p273) target = $region96
        $region93: #{tpu_custom_call.1} parent=11 // loop_body
          %s277 = scalar_lea.sflag [#allocation5], 2
          %279 = dma.done %s277, 16
        $region94: #{tpu_custom_call.1} parent=11 // loop_footer
          %s276 = sadd.s32 1, %s272
        $region95: #{tpu_custom_call.1} parent=11 // loop_footer_branch
          %271 = sbr.rel target = $region91
        $region96: #{tpu_custom_call.1} parent=11 // loop_exit
          _
        %v280 = vld [vmem:[#allocation4] sm:$0xff]
        %v281 = vmul.f32 %v280, %v252
        %282 = vadd.xlane.f32.xlu0 %v281
        %v283 = vpop.xlane.xlu0 %282
        %v284 = vmax.f32 %v283, -10.0
        %v285 = vmin.f32 %v284, 10.0
        %v286 = vmul.f32 %v285, 1.442695
        %v287 = vpow.pop %v286
        %v288 = vadd.f32 %v287, 1.0
        %v289 = vlog2.pop %v288
        %v290 = vmul.f32 %v289, 0.6931472
        %v291 = vadd.f32 %v290, 0.0
        %s292 = scalar_lea.vmem [#allocation4], 8
        %v293 = vld [vmem:[%s292] sm:$0xff]
        %v294 = vmul.f32 %v293, %v252
        %295 = vadd.xlane.f32.xlu0 %v294
        %v296 = vpop.xlane.xlu0 %295
        %v297 = vmax.f32 %v296, -10.0
        %v298 = vmin.f32 %v297, 10.0
        %v299 = vmul.f32 %v298, 1.442695
        %v300 = vpow.pop %v299
        %v301 = vadd.f32 %v300, 1.0
        %v302 = vlog2.pop %v301
        %v303 = vmul.f32 %v302, 0.6931472
        %v304 = vadd.f32 %v291, %v303
        %s305 = scalar_lea.vmem [#allocation4], 16
        %v306 = vld [vmem:[%s305] sm:$0xff]
        %v307 = vmul.f32 %v306, %v252
        %308 = vadd.xlane.f32.xlu0 %v307
        %v309 = vpop.xlane.xlu0 %308
        %v310 = vmax.f32 %v309, -10.0
        %v311 = vmin.f32 %v310, 10.0
        %v312 = vmul.f32 %v311, 1.442695
        %v313 = vpow.pop %v312
        %v314 = vadd.f32 %v313, 1.0
        %v315 = vlog2.pop %v314
        %v316 = vmul.f32 %v315, 0.6931472
        %v317 = vadd.f32 %v304, %v316
        %s318 = scalar_lea.vmem [#allocation4], 24
        %v319 = vld [vmem:[%s318] sm:$0xff]
        %v320 = vmul.f32 %v319, %v252
        %321 = vadd.xlane.f32.xlu0 %v320
        %v322 = vpop.xlane.xlu0 %321
        %v323 = vmax.f32 %v322, -10.0
        %v324 = vmin.f32 %v323, 10.0
        %v325 = vmul.f32 %v324, 1.442695
        %v326 = vpow.pop %v325
        %v327 = vadd.f32 %v326, 1.0
        %v328 = vlog2.pop %v327
        %v329 = vmul.f32 %v328, 0.6931472
        %v330 = vadd.f32 %v317, %v329
        %s331 = scalar_lea.vmem [#allocation4], 32
        %v332 = vld [vmem:[%s331] sm:$0xff]
        %v333 = vmul.f32 %v332, %v252
        %334 = vadd.xlane.f32.xlu0 %v333
        %v335 = vpop.xlane.xlu0 %334
        %v336 = vmax.f32 %v335, -10.0
        %v337 = vmin.f32 %v336, 10.0
        %v338 = vmul.f32 %v337, 1.442695
        %v339 = vpow.pop %v338
        %v340 = vadd.f32 %v339, 1.0
        %v341 = vlog2.pop %v340
        %v342 = vmul.f32 %v341, 0.6931472
        %v343 = vadd.f32 %v330, %v342
        %v344 = vmul.f32 %v343, 0.2
        %v345 = vsel %vm258, %v344, 0.0
        %vm346 = vcmask 7168
        %v347 = vsel %vm346, %v270, 0.0
        %348 = vadd.xlane.f32.xlu0 %v347
        %v349 = vpop.xlane.xlu0 %348
        %v350 = vrot.slane %v349, 4
        %v351 = vadd.f32 %v349, %v350
        %v352 = vrot.slane %v351, 2
        %v353 = vadd.f32 %v351, %v352
        %v354 = vrot.slane %v353, 1
        %v355 = vadd.f32 %v353, %v354
        %s356 = vtos %v355
        %v357 = vsel %vm346, %v345, 0.0
        %358 = vadd.xlane.f32.xlu0 %v357
        %v359 = vpop.xlane.xlu0 %358
        %v360 = vrot.slane %v359, 4
        %v361 = vadd.f32 %v359, %v360
        %v362 = vrot.slane %v361, 2
        %v363 = vadd.f32 %v361, %v362
        %v364 = vrot.slane %v363, 1
        %v365 = vadd.f32 %v363, %v364
        %s366 = vtos %v365
        %v367 = vlaneseq
        %v368 = vand.u32 %v367, 127
        %vm369 = vcmp.eq.s32.totalorder %v255, 0
        %vm370 = vcmp.eq.s32.totalorder %v368, 0
        %vm371 = vmand %vm369, %vm370
        %v372 = vsel %vm371, 1, 0
        %v373 = vcvt.s32.f32 %v372
        %vm374 = vcmp.eq.s32.totalorder %v368, 1
        %vm375 = vmand %vm369, %vm374
        %v376 = vsel %vm375, 1, 0
        %v377 = vcvt.s32.f32 %v376
        %v378 = vstv %s356
        %v379 = vmul.f32 %v373, %v378
        %v380 = vstv %s366
        %v381 = vmul.f32 %v377, %v380
        %v382 = vadd.f32 %v379, %v381
        %p383 = scmp.eq.s32.totalorder %s33, 0
        // Predicated region
        $region97: #{tpu_custom_call.1} parent=11 // pred_check
          %p384 = pneg %p383
        $region98: #{tpu_custom_call.1} parent=11 // pred_check_branch
          %386 = sbr.rel (%p384) target = $region100
        $region99: #{tpu_custom_call.1} parent=11 // pred_region
          %387 = vst [vmem:[%s72] sm:$0xff] 0.0
        $region100: #{tpu_custom_call.1} parent=11 // pred_fallthru
          _
        %v388 = vld [vmem:[%s72] sm:$0xff]
        %v389 = vadd.f32 %v388, %v382
        %390 = vst [vmem:[%s72] sm:$0xff] %v389
        %s391 = sand.u32 %s45, 1
        %s392 = scalar_lea.sflag [#allocation11], %s391
        %s393 = sand.u32 %s45, 1
        %s394 = smul.addr %s393, 8
        %s395 = scalar_lea.vmem [#allocation10], %s394
        // Predicated region
        $region101: #{tpu_custom_call.1} parent=11 // pred_check
          %p396 = pneg %p51
        $region102: #{tpu_custom_call.1} parent=11 // pred_check_branch
          %398 = sbr.rel (%p396) target = $region104
        $region103: #{tpu_custom_call.1} parent=11 // pred_region
          %s400 = ssub.s32 128, 128
          %401 = vsyncadd %s392, %s400
          %s402 = smul.addr %s32, 128
          %s403 = scalar_lea.hbm %s5, %s402
          %s405 = sshll.u32 %s395, 4
          %s406 = int_to_ptr.vmem [resolvable:$true] %s405
          %408 = dma.vmem_to_hbm [thread:$0]  %s406, 128, %s403, %s392
        $region104: #{tpu_custom_call.1} parent=11 // pred_fallthru
          _
      $region12: #{tpu_custom_call.1} parent=5 // pred_fallthru
        _
      %p409 = scmp.le.s32.totalorder 1, %s26
      // Predicated region
      $region105: #{tpu_custom_call.1} parent=5 // pred_check
        %p410 = pneg %p409
      $region106: #{tpu_custom_call.1} parent=5 // pred_check_branch
        %412 = sbr.rel (%p410) target = $region108
      $region107: #{tpu_custom_call.1} parent=5 // pred_region
        %s413 = ssub.s32 %s26, 1
        // Predicated region
        $region109: #{tpu_custom_call.1} parent=107 // pred_check
          %p414 = pneg %p57
        $region110: #{tpu_custom_call.1} parent=107 // pred_check_branch
          %416 = sbr.rel (%p414) target = $region112
        $region111: #{tpu_custom_call.1} parent=107 // pred_region
          %s417 = sand.u32 %s48, 1
          %s418 = scalar_lea.sflag [#allocation11], %s417
          %s419 = sand.u32 %s48, 1
          %s420 = smul.addr %s419, 8
          %s421 = scalar_lea.vmem [#allocation10], %s420
          %422 = dma.done %s418, 128
        $region112: #{tpu_custom_call.1} parent=107 // pred_fallthru
          _
      $region108: #{tpu_custom_call.1} parent=5 // pred_fallthru
        _
    $region6: #{tpu_custom_call.1} parent=1 // loop_footer
      %s30 = sadd.s32 1, %s26
    $region7: #{tpu_custom_call.1} parent=1 // loop_footer_branch
      %25 = sbr.rel target = $region3
    $region8: #{tpu_custom_call.1} parent=1 // loop_exit
      _
    %423 = vsyncpa [#allocation11], 1
    %s424 = scalar_lea.sflag [#allocation11], 1
    %425 = vsyncpa %s424, 1
  %426 = vsyncmov [#allocation5]
  %s427 = vpop.sfrf %426
  %p428 = scmp.eq.s32.totalorder %s427, 0
  %p429 = pneg %p428
  %431 = shalt.err (%p429)
  %s432 = scalar_lea.sflag [#allocation5], 1
  %433 = vsyncmov %s432
  %s434 = vpop.sfrf %433
  %p435 = scmp.eq.s32.totalorder %s434, 0
  %p436 = pneg %p435
  %438 = shalt.err (%p436)
  %s439 = scalar_lea.sflag [#allocation5], 2
  %440 = vsyncmov %s439
  %s441 = vpop.sfrf %440
  %p442 = scmp.eq.s32.totalorder %s441, 0
  %p443 = pneg %p442
  %445 = shalt.err (%p443)

</llo_original>
